<compile_context>
chip_gen: v7x
topology: tpu7x:2x2x1
jax: 0.10.0
libtpu: 0.0.40
codegen_flags: <defaults>
</compile_context>

<pallas_src>
import jax
import jax.numpy as jnp
from jax.experimental import pallas as pl
from jax.experimental.pallas import tpu as pltpu


# ---------------- fused kernel ----------------

def _fused_amin_kernel(x_ref, y_ref, z_ref, ox_ref, oy_ref, oz_ref):
    # x: (B, N) -> min over axis 0 (sublane reduce) -> (1, N) lane-dense row.
    ox_ref[...] = jnp.min(x_ref[...], axis=0, keepdims=True)

    # y: (A, Yb, Yc) -> min over axes (1, 2), done as two single-axis reduces.
    y1 = jnp.min(y_ref[...], axis=2)                    # (A, Yb)
    oy_ref[...] = jnp.min(y1, axis=1, keepdims=True)    # (A, 1)

    # z: (D0, D1, D2, D3) -> min over axes (0, 3).
    z1 = jnp.min(z_ref[...], axis=3)                    # (D0, D1, D2)
    oz_ref[...] = jnp.min(z1, axis=0)                   # (D1, D2)


# ---------------- wrapper ----------------

@jax.jit
def model_forward(x, y, z):
    B, N = x.shape
    A, Yb, Yc = y.shape
    D0, D1, D2, D3 = z.shape

    vmem = pltpu.MemorySpace.VMEM
    elems_in = x.size + y.size + z.size
    elems_out = N + A + D1 * D2
    cost = pl.CostEstimate(
        flops=elems_in,                       # ~one compare/min per input element
        transcendentals=0,
        bytes_accessed=(elems_in + elems_out) * 4,
    )

    ox, oy, oz = pl.pallas_call(
        _fused_amin_kernel,
        out_shape=(
            jax.ShapeDtypeStruct((1, N), x.dtype),
            jax.ShapeDtypeStruct((A, 1), y.dtype),
            jax.ShapeDtypeStruct((D1, D2), z.dtype),
        ),
        in_specs=[
            pl.BlockSpec(memory_space=vmem),   # whole array, VMEM-resident
            pl.BlockSpec(memory_space=vmem),
            pl.BlockSpec(memory_space=vmem),
        ],
        out_specs=(
            pl.BlockSpec(memory_space=vmem),
            pl.BlockSpec(memory_space=vmem),
            pl.BlockSpec(memory_space=vmem),
        ),
        cost_estimate=cost,
    )(x, y, z)

    # Restore the PyTorch result shapes (pure metadata reshapes).
    return ox.reshape(N), oy.reshape(A), oz.reshape(1, D1, D2, 1)


# ---------------- main ----------------

if __name__ == "__main__":
    key = jax.random.PRNGKey(0)
    kx, ky, kz = jax.random.split(key, 3)

    # Shapes match the pnnx test inputs (small).
    x = jax.random.uniform(kx, (3, 16), dtype=jnp.float32)
    y = jax.random.uniform(ky, (5, 9, 11), dtype=jnp.float32)
    z = jax.random.uniform(kz, (8, 5, 9, 10), dtype=jnp.float32)

    ox, oy, oz = model_forward(x, y, z)
    jax.block_until_ready((ox, oy, oz))

    # Correctness check against pure-JAX reference (exact: min is exact).
    rx = jnp.min(x, axis=0)
    ry = jnp.min(y, axis=(1, 2))
    rz = jnp.min(z, axis=(0, 3), keepdims=True)
    assert ox.shape == rx.shape and oy.shape == ry.shape and oz.shape == rz.shape
    assert bool(jnp.array_equal(ox, rx))
    assert bool(jnp.array_equal(oy, ry))
    assert bool(jnp.array_equal(oz, rz))

    print("KERNEL_OK")
</pallas_src>

<mosaic_0001>
module attributes {stable_mosaic.version = 11 : i64} {
  func.func @_fused_amin_kernel(%arg0: memref<3x16xf32, #tpu.memory_space<vmem>>, %arg1: memref<5x9x11xf32, #tpu.memory_space<vmem>>, %arg2: memref<8x5x9x10xf32, #tpu.memory_space<vmem>>, %arg3: memref<1x16xf32, #tpu.memory_space<vmem>>, %arg4: memref<5x1xf32, #tpu.memory_space<vmem>>, %arg5: memref<5x9xf32, #tpu.memory_space<vmem>>) attributes {dimension_semantics = [], scalar_prefetch = 0 : i64, scratch_operands = 0 : i64, tpu.core_type = #tpu.core_type<tc>} {
    %c0 = arith.constant 0 : index
    %c0_0 = arith.constant 0 : index
    %0 = vector.load %arg0[%c0, %c0_0] : memref<3x16xf32, #tpu.memory_space<vmem>>, vector<3x16xf32>
    %cst = arith.constant dense<0x7F800000> : vector<16xf32>
    %1 = vector.multi_reduction <minimumf>, %0, %cst [0] : vector<3x16xf32> to vector<16xf32>
    %2 = vector.shape_cast %1 : vector<16xf32> to vector<1x16xf32>
    %c0_1 = arith.constant 0 : index
    %c0_2 = arith.constant 0 : index
    %3 = vector.load %arg3[%c0_1, %c0_2] : memref<1x16xf32, #tpu.memory_space<vmem>>, vector<1x16xf32>
    tpu.vector_store %arg3[%c0_1, %c0_2], %2 {strides = array<i32>} : memref<1x16xf32, #tpu.memory_space<vmem>>, vector<1x16xf32>,
    %c0_3 = arith.constant 0 : index
    %c0_4 = arith.constant 0 : index
    %c0_5 = arith.constant 0 : index
    %4 = vector.load %arg1[%c0_3, %c0_4, %c0_5] : memref<5x9x11xf32, #tpu.memory_space<vmem>>, vector<5x9x11xf32>
    %cst_6 = arith.constant dense<0x7F800000> : vector<5x9xf32>
    %5 = vector.multi_reduction <minimumf>, %4, %cst_6 [2] : vector<5x9x11xf32> to vector<5x9xf32>
    %cst_7 = arith.constant dense<0x7F800000> : vector<5xf32>
    %6 = vector.multi_reduction <minimumf>, %5, %cst_7 [1] : vector<5x9xf32> to vector<5xf32>
    %7 = vector.shape_cast %6 : vector<5xf32> to vector<5x1xf32>
    %c0_8 = arith.constant 0 : index
    %c0_9 = arith.constant 0 : index
    %8 = vector.load %arg4[%c0_8, %c0_9] : memref<5x1xf32, #tpu.memory_space<vmem>>, vector<5x1xf32>
    tpu.vector_store %arg4[%c0_8, %c0_9], %7 {strides = array<i32>} : memref<5x1xf32, #tpu.memory_space<vmem>>, vector<5x1xf32>,
    %c0_10 = arith.constant 0 : index
    %c0_11 = arith.constant 0 : index
    %c0_12 = arith.constant 0 : index
    %c0_13 = arith.constant 0 : index
    %9 = vector.load %arg2[%c0_10, %c0_11, %c0_12, %c0_13] : memref<8x5x9x10xf32, #tpu.memory_space<vmem>>, vector<8x5x9x10xf32>
    %cst_14 = arith.constant dense<0x7F800000> : vector<8x5x9xf32>
    %10 = vector.multi_reduction <minimumf>, %9, %cst_14 [3] : vector<8x5x9x10xf32> to vector<8x5x9xf32>
    %cst_15 = arith.constant dense<0x7F800000> : vector<5x9xf32>
    %11 = vector.multi_reduction <minimumf>, %10, %cst_15 [0] : vector<8x5x9xf32> to vector<5x9xf32>
    %c0_16 = arith.constant 0 : index
    %c0_17 = arith.constant 0 : index
    %12 = vector.load %arg5[%c0_16, %c0_17] : memref<5x9xf32, #tpu.memory_space<vmem>>, vector<5x9xf32>
    tpu.vector_store %arg5[%c0_16, %c0_17], %11 {strides = array<i32>} : memref<5x9xf32, #tpu.memory_space<vmem>>, vector<5x9xf32>,
    return
  }
}

</mosaic_0001>

<llo_original>
// kernel: model_forward.1
$region0: #{model_forward.1}
  #allocation0 [shape = 'u32[]', space=smem, size = 0x4, offset = 0x4, fixed_abs, tag = 'smem constant byte address 0x4 - core index']
  #allocation1 [shape = 'u32[144,128]{1,0:T(1,128)}', space=vmem, size = 0x12000, scoped, tag = 'internal scratch']
  %s0 = inlined_call_operand.vmem [shape: f32[3,16], index: 0, kind: input, shape index: {}]
  %s1 = inlined_call_operand.vmem [shape: f32[5,9,11], index: 1, kind: input, shape index: {}]
  %s2 = inlined_call_operand.vmem [shape: f32[8,5,9,10], index: 2, kind: input, shape index: {}]
  %s3 = inlined_call_operand.hbm [shape: f32[1,16], index: 3, kind: output, shape index: {0}]
  %s4 = inlined_call_operand.vmem [shape: f32[5,1], index: 4, kind: output, shape index: {1}]
  %s5 = inlined_call_operand.vmem [shape: f32[5,9], index: 5, kind: output, shape index: {2}]
  %6 = xla_tuple %s3, %s4, %s5
  %s7 = sld [smem:[#allocation0]]
  $region38: #{model_forward.1} parent=0
    _
  %s9 = ssub.s32 1, %s7
  %s10 = scalar_select 0, %s9, %s7
  $region1: #{model_forward.1} parent=0
    #allocation2 [shape = 'u8[512]{0}', space=vmem, size = 0x400, scoped, tag = 'output window, operand 0, single buffered']
    #allocation3 [shape = 's32[1]{0}', space=sflag, size = 0x4, scoped, tag = 'scoped memory for model_forward.1']
    %11 = vsyncpa [#allocation3], 0
    // Predicated region
    $region2: #{model_forward.1} parent=1 // pred_check
      _
    $region3: #{model_forward.1} parent=1 // pred_check_branch
      %13 = sbr.rel (0) target = $region5
    $region4: #{model_forward.1} parent=1 // pred_region
      _
    $region5: #{model_forward.1} parent=1 // pred_fallthru
      _
    // Predicated region
    $region6: #{model_forward.1} parent=1 // pred_check
      _
    $region7: #{model_forward.1} parent=1 // pred_check_branch
      %15 = sbr.rel (0) target = $region9
    $region8: #{model_forward.1} parent=1 // pred_region
      _
    $region9: #{model_forward.1} parent=1 // pred_fallthru
      _
    // Predicated region
    $region10: #{model_forward.1} parent=1 // pred_check
      _
    $region11: #{model_forward.1} parent=1 // pred_check_branch
      %17 = sbr.rel (0) target = $region13
    $region12: #{model_forward.1} parent=1 // pred_region
      _
    $region13: #{model_forward.1} parent=1 // pred_fallthru
      _
    %v18 = vld [vmem:[%s0] sm:$0x7]
    %vm19 = vcmask 124928
    %v20 = vsel %vm19, %v18, inf
    %v21 = vrot.slane %v20, 4
    %v22 = vmin.f32 %v20, %v21
    %v23 = vrot.slane %v22, 2
    %v24 = vmin.f32 %v22, %v23
    %v25 = vrot.slane %v24, 1
    %v26 = vmin.f32 %v24, %v25
    %vm27 = vcmask 122880
    %28 = vst.msk [vmem:[#allocation2] sm:$0x1] %vm27, %v26
    %v29 = vld [vmem:[%s1] sm:$0xff]
    %v30 = vld [vmem:[%s1 + $0x8] sm:$0x1]
    %v31 = vld [vmem:[%s1 + $0x10] sm:$0xff]
    %v32 = vld [vmem:[%s1 + $0x18] sm:$0x1]
    %v33 = vld [vmem:[%s1 + $0x20] sm:$0xff]
    %v34 = vld [vmem:[%s1 + $0x28] sm:$0x1]
    %v35 = vld [vmem:[%s1 + $0x30] sm:$0xff]
    %v36 = vld [vmem:[%s1 + $0x38] sm:$0x1]
    %v37 = vld [vmem:[%s1 + $0x40] sm:$0xff]
    %v38 = vld [vmem:[%s1 + $0x48] sm:$0x1]
    %vm39 = vcmask 89088
    %v40 = vsel %vm39, %v29, inf
    %41 = vmin.xlane.f32.xlu0 %v40
    %v42 = vpop.xlane.xlu0 %41
    %vm43 = vcmask 81920
    %v44 = vsel %vm43, %v30, inf
    %45 = vmin.xlane.f32.xlu0 %v44
    %v46 = vpop.xlane.xlu0 %45
    %v47 = vsel %vm39, %v31, inf
    %48 = vmin.xlane.f32.xlu0 %v47
    %v49 = vpop.xlane.xlu0 %48
    %v50 = vsel %vm43, %v32, inf
    %51 = vmin.xlane.f32.xlu0 %v50
    %v52 = vpop.xlane.xlu0 %51
    %v53 = vsel %vm39, %v33, inf
    %54 = vmin.xlane.f32.xlu0 %v53
    %v55 = vpop.xlane.xlu0 %54
    %v56 = vsel %vm43, %v34, inf
    %57 = vmin.xlane.f32.xlu0 %v56
    %v58 = vpop.xlane.xlu0 %57
    %v59 = vsel %vm39, %v35, inf
    %60 = vmin.xlane.f32.xlu0 %v59
    %v61 = vpop.xlane.xlu0 %60
    %v62 = vsel %vm43, %v36, inf
    %63 = vmin.xlane.f32.xlu0 %v62
    %v64 = vpop.xlane.xlu0 %63
    %v65 = vsel %vm39, %v37, inf
    %66 = vmin.xlane.f32.xlu0 %v65
    %v67 = vpop.xlane.xlu0 %66
    %v68 = vsel %vm43, %v38, inf
    %69 = vmin.xlane.f32.xlu0 %v68
    %v70 = vpop.xlane.xlu0 %69
    %v81 = vlaneseq
    %v82 = vand.u32 %v81, 127
    %v83 = vlaneseq
    %v84 = vshrl.u32 %v83, 7
    %v85 = vsub.s32 %v82, %v84
    %v86 = vrot.slane %v42, %v85
    %v87 = vadd.s32 %v82, 4294967288
    %v88 = vlaneseq
    %v89 = vshrl.u32 %v88, 7
    %v90 = vsub.s32 %v87, %v89
    %v91 = vrot.slane %v46, %v90
    %vm92 = vcmask 130112
    %v93 = vsel %vm92, %v91, %v86
    %v94 = vlaneseq
    %v95 = vshrl.u32 %v94, 7
    %v96 = vsub.s32 %v82, %v95
    %v97 = vrot.slane %v49, %v96
    %v98 = vlaneseq
    %v99 = vshrl.u32 %v98, 7
    %v100 = vsub.s32 %v87, %v99
    %v101 = vrot.slane %v52, %v100
    %v102 = vsel %vm92, %v101, %v97
    %v103 = vlaneseq
    %v104 = vshrl.u32 %v103, 7
    %v105 = vsub.s32 %v82, %v104
    %v106 = vrot.slane %v55, %v105
    %v107 = vlaneseq
    %v108 = vshrl.u32 %v107, 7
    %v109 = vsub.s32 %v87, %v108
    %v110 = vrot.slane %v58, %v109
    %v111 = vsel %vm92, %v110, %v106
    %v112 = vlaneseq
    %v113 = vshrl.u32 %v112, 7
    %v114 = vsub.s32 %v82, %v113
    %v115 = vrot.slane %v61, %v114
    %v116 = vlaneseq
    %v117 = vshrl.u32 %v116, 7
    %v118 = vsub.s32 %v87, %v117
    %v119 = vrot.slane %v64, %v118
    %v120 = vsel %vm92, %v119, %v115
    %v121 = vlaneseq
    %v122 = vshrl.u32 %v121, 7
    %v123 = vsub.s32 %v82, %v122
    %v124 = vrot.slane %v67, %v123
    %v125 = vlaneseq
    %v126 = vshrl.u32 %v125, 7
    %v127 = vsub.s32 %v87, %v126
    %v128 = vrot.slane %v70, %v127
    %v129 = vsel %vm92, %v128, %v124
    %vm130 = vcmask 1041409
    %v131 = vsel %vm130, %v102, %v93
    %vm132 = vcmask 1042434
    %v133 = vsel %vm132, %v111, %v131
    %vm134 = vcmask 1043459
    %v135 = vsel %vm134, %v120, %v133
    %vm136 = vcmask 1044484
    %v137 = vsel %vm136, %v129, %v135
    %vm139 = vcmask 69632
    %v140 = vsel %vm139, %v137, inf
    %141 = vmin.xlane.f32.xlu0 %v140
    %v142 = vpop.xlane.xlu0 %141
    %vm143 = vcmask 4096
    %144 = vst.msk [vmem:[%s4] sm:$0x1f] %vm143, %v142
    %v145 = vld [vmem:[%s2] sm:$0xff]
    %v146 = vld [vmem:[%s2 + $0x8] sm:$0x1]
    %v147 = vld [vmem:[%s2 + $0x10] sm:$0xff]
    %v148 = vld [vmem:[%s2 + $0x18] sm:$0x1]
    %v149 = vld [vmem:[%s2 + $0x20] sm:$0xff]
    %v150 = vld [vmem:[%s2 + $0x28] sm:$0x1]
    %v151 = vld [vmem:[%s2 + $0x30] sm:$0xff]
    %v152 = vld [vmem:[%s2 + $0x38] sm:$0x1]
    %v153 = vld [vmem:[%s2 + $0x40] sm:$0xff]
    %v154 = vld [vmem:[%s2 + $0x48] sm:$0x1]
    %v155 = vld [vmem:[%s2 + $0x50] sm:$0xff]
    %v156 = vld [vmem:[%s2 + $0x58] sm:$0x1]
    %v157 = vld [vmem:[%s2 + $0x60] sm:$0xff]
    %v158 = vld [vmem:[%s2 + $0x68] sm:$0x1]
    %v159 = vld [vmem:[%s2 + $0x70] sm:$0xff]
    %v160 = vld [vmem:[%s2 + $0x78] sm:$0x1]
    %v161 = vld [vmem:[%s2 + $0x80] sm:$0xff]
    %v162 = vld [vmem:[%s2 + $0x88] sm:$0x1]
    %v163 = vld [vmem:[%s2 + $0x90] sm:$0xff]
    %v164 = vld [vmem:[%s2 + $0x98] sm:$0x1]
    %v165 = vld [vmem:[%s2 + $0xa0] sm:$0xff]
    %v166 = vld [vmem:[%s2 + $0xa8] sm:$0x1]
    %v167 = vld [vmem:[%s2 + $0xb0] sm:$0xff]
    %v168 = vld [vmem:[%s2 + $0xb8] sm:$0x1]
    %v169 = vld [vmem:[%s2 + $0xc0] sm:$0xff]
    %v170 = vld [vmem:[%s2 + $0xc8] sm:$0x1]
    %v171 = vld [vmem:[%s2 + $0xd0] sm:$0xff]
    %v172 = vld [vmem:[%s2 + $0xd8] sm:$0x1]
    %v173 = vld [vmem:[%s2 + $0xe0] sm:$0xff]
    %v174 = vld [vmem:[%s2 + $0xe8] sm:$0x1]
    %v175 = vld [vmem:[%s2 + $0xf0] sm:$0xff]
    %v176 = vld [vmem:[%s2 + $0xf8] sm:$0x1]
    %v177 = vld [vmem:[%s2 + $0x100] sm:$0xff]
    %v178 = vld [vmem:[%s2 + $0x108] sm:$0x1]
    %v179 = vld [vmem:[%s2 + $0x110] sm:$0xff]
    %v180 = vld [vmem:[%s2 + $0x118] sm:$0x1]
    %v181 = vld [vmem:[%s2 + $0x120] sm:$0xff]
    %v182 = vld [vmem:[%s2 + $0x128] sm:$0x1]
    %v183 = vld [vmem:[%s2 + $0x130] sm:$0xff]
    %v184 = vld [vmem:[%s2 + $0x138] sm:$0x1]
    %v185 = vld [vmem:[%s2 + $0x140] sm:$0xff]
    %v186 = vld [vmem:[%s2 + $0x148] sm:$0x1]
    %v187 = vld [vmem:[%s2 + $0x150] sm:$0xff]
    %v188 = vld [vmem:[%s2 + $0x158] sm:$0x1]
    %v189 = vld [vmem:[%s2 + $0x160] sm:$0xff]
    %v190 = vld [vmem:[%s2 + $0x168] sm:$0x1]
    %v191 = vld [vmem:[%s2 + $0x170] sm:$0xff]
    %v192 = vld [vmem:[%s2 + $0x178] sm:$0x1]
    %v193 = vld [vmem:[%s2 + $0x180] sm:$0xff]
    %v194 = vld [vmem:[%s2 + $0x188] sm:$0x1]
    %v195 = vld [vmem:[%s2 + $0x190] sm:$0xff]
    %v196 = vld [vmem:[%s2 + $0x198] sm:$0x1]
    %v197 = vld [vmem:[%s2 + $0x1a0] sm:$0xff]
    %v198 = vld [vmem:[%s2 + $0x1a8] sm:$0x1]
    %v199 = vld [vmem:[%s2 + $0x1b0] sm:$0xff]
    %v200 = vld [vmem:[%s2 + $0x1b8] sm:$0x1]
    %v201 = vld [vmem:[%s2 + $0x1c0] sm:$0xff]
    %v202 = vld [vmem:[%s2 + $0x1c8] sm:$0x1]
    %v203 = vld [vmem:[%s2 + $0x1d0] sm:$0xff]
    %v204 = vld [vmem:[%s2 + $0x1d8] sm:$0x1]
    %v205 = vld [vmem:[%s2 + $0x1e0] sm:$0xff]
    %v206 = vld [vmem:[%s2 + $0x1e8] sm:$0x1]
    %v207 = vld [vmem:[%s2 + $0x1f0] sm:$0xff]
    %v208 = vld [vmem:[%s2 + $0x1f8] sm:$0x1]
    %v209 = vld [vmem:[%s2 + $0x200] sm:$0xff]
    %v210 = vld [vmem:[%s2 + $0x208] sm:$0x1]
    %v211 = vld [vmem:[%s2 + $0x210] sm:$0xff]
    %v212 = vld [vmem:[%s2 + $0x218] sm:$0x1]
    %v213 = vld [vmem:[%s2 + $0x220] sm:$0xff]
    %v214 = vld [vmem:[%s2 + $0x228] sm:$0x1]
    %v215 = vld [vmem:[%s2 + $0x230] sm:$0xff]
    %v216 = vld [vmem:[%s2 + $0x238] sm:$0x1]
    %v217 = vld [vmem:[%s2 + $0x240] sm:$0xff]
    %v218 = vld [vmem:[%s2 + $0x248] sm:$0x1]
    %v219 = vld [vmem:[%s2 + $0x250] sm:$0xff]
    %v220 = vld [vmem:[%s2 + $0x258] sm:$0x1]
    %v221 = vld [vmem:[%s2 + $0x260] sm:$0xff]
    %v222 = vld [vmem:[%s2 + $0x268] sm:$0x1]
    %v223 = vld [vmem:[%s2 + $0x270] sm:$0xff]
    %v224 = vld [vmem:[%s2 + $0x278] sm:$0x1]
    %vm225 = vcmask 80896
    %v226 = vsel %vm225, %v145, inf
    %227 = vmin.xlane.f32.xlu0 %v226
    %v228 = vpop.xlane.xlu0 %227
    %vm229 = vcmask 73728
    %v230 = vsel %vm229, %v146, inf
    %231 = vmin.xlane.f32.xlu0 %v230
    %v232 = vpop.xlane.xlu0 %231
    %v233 = vsel %vm225, %v147, inf
    %234 = vmin.xlane.f32.xlu0 %v233
    %v235 = vpop.xlane.xlu0 %234
    %v236 = vsel %vm229, %v148, inf
    %237 = vmin.xlane.f32.xlu0 %v236
    %v238 = vpop.xlane.xlu0 %237
    %v239 = vsel %vm225, %v149, inf
    %240 = vmin.xlane.f32.xlu0 %v239
    %v241 = vpop.xlane.xlu0 %240
    %v242 = vsel %vm229, %v150, inf
    %243 = vmin.xlane.f32.xlu0 %v242
    %v244 = vpop.xlane.xlu0 %243
    %v245 = vsel %vm225, %v151, inf
    %246 = vmin.xlane.f32.xlu0 %v245
    %v247 = vpop.xlane.xlu0 %246
    %v248 = vsel %vm229, %v152, inf
    %249 = vmin.xlane.f32.xlu0 %v248
    %v250 = vpop.xlane.xlu0 %249
    %v251 = vsel %vm225, %v153, inf
    %252 = vmin.xlane.f32.xlu0 %v251
    %v253 = vpop.xlane.xlu0 %252
    %v254 = vsel %vm229, %v154, inf
    %255 = vmin.xlane.f32.xlu0 %v254
    %v256 = vpop.xlane.xlu0 %255
    %v257 = vsel %vm225, %v155, inf
    %258 = vmin.xlane.f32.xlu0 %v257
    %v259 = vpop.xlane.xlu0 %258
    %v260 = vsel %vm229, %v156, inf
    %261 = vmin.xlane.f32.xlu0 %v260
    %v262 = vpop.xlane.xlu0 %261
    %v263 = vsel %vm225, %v157, inf
    %264 = vmin.xlane.f32.xlu0 %v263
    %v265 = vpop.xlane.xlu0 %264
    %v266 = vsel %vm229, %v158, inf
    %267 = vmin.xlane.f32.xlu0 %v266
    %v268 = vpop.xlane.xlu0 %267
    %v269 = vsel %vm225, %v159, inf
    %270 = vmin.xlane.f32.xlu0 %v269
    %v271 = vpop.xlane.xlu0 %270
    %v272 = vsel %vm229, %v160, inf
    %273 = vmin.xlane.f32.xlu0 %v272
    %v274 = vpop.xlane.xlu0 %273
    %v275 = vsel %vm225, %v161, inf
    %276 = vmin.xlane.f32.xlu0 %v275
    %v277 = vpop.xlane.xlu0 %276
    %v278 = vsel %vm229, %v162, inf
    %279 = vmin.xlane.f32.xlu0 %v278
    %v280 = vpop.xlane.xlu0 %279
    %v281 = vsel %vm225, %v163, inf
    %282 = vmin.xlane.f32.xlu0 %v281
    %v283 = vpop.xlane.xlu0 %282
    %v284 = vsel %vm229, %v164, inf
    %285 = vmin.xlane.f32.xlu0 %v284
    %v286 = vpop.xlane.xlu0 %285
    %v287 = vsel %vm225, %v165, inf
    %288 = vmin.xlane.f32.xlu0 %v287
    %v289 = vpop.xlane.xlu0 %288
    %v290 = vsel %vm229, %v166, inf
    %291 = vmin.xlane.f32.xlu0 %v290
    %v292 = vpop.xlane.xlu0 %291
    %v293 = vsel %vm225, %v167, inf
    %294 = vmin.xlane.f32.xlu0 %v293
    %v295 = vpop.xlane.xlu0 %294
    %v296 = vsel %vm229, %v168, inf
    %297 = vmin.xlane.f32.xlu0 %v296
    %v298 = vpop.xlane.xlu0 %297
    %v299 = vsel %vm225, %v169, inf
    %300 = vmin.xlane.f32.xlu0 %v299
    %v301 = vpop.xlane.xlu0 %300
    %v302 = vsel %vm229, %v170, inf
    %303 = vmin.xlane.f32.xlu0 %v302
    %v304 = vpop.xlane.xlu0 %303
    %v305 = vsel %vm225, %v171, inf
    %306 = vmin.xlane.f32.xlu0 %v305
    %v307 = vpop.xlane.xlu0 %306
    %v308 = vsel %vm229, %v172, inf
    %309 = vmin.xlane.f32.xlu0 %v308
    %v310 = vpop.xlane.xlu0 %309
    %v311 = vsel %vm225, %v173, inf
    %312 = vmin.xlane.f32.xlu0 %v311
    %v313 = vpop.xlane.xlu0 %312
    %v314 = vsel %vm229, %v174, inf
    %315 = vmin.xlane.f32.xlu0 %v314
    %v316 = vpop.xlane.xlu0 %315
    %v317 = vsel %vm225, %v175, inf
    %318 = vmin.xlane.f32.xlu0 %v317
    %v319 = vpop.xlane.xlu0 %318
    %v320 = vsel %vm229, %v176, inf
    %321 = vmin.xlane.f32.xlu0 %v320
    %v322 = vpop.xlane.xlu0 %321
    %v323 = vsel %vm225, %v177, inf
    %324 = vmin.xlane.f32.xlu0 %v323
    %v325 = vpop.xlane.xlu0 %324
    %v326 = vsel %vm229, %v178, inf
    %327 = vmin.xlane.f32.xlu0 %v326
    %v328 = vpop.xlane.xlu0 %327
    %v329 = vsel %vm225, %v179, inf
    %330 = vmin.xlane.f32.xlu0 %v329
    %v331 = vpop.xlane.xlu0 %330
    %v332 = vsel %vm229, %v180, inf
    %333 = vmin.xlane.f32.xlu0 %v332
    %v334 = vpop.xlane.xlu0 %333
    %v335 = vsel %vm225, %v181, inf
    %336 = vmin.xlane.f32.xlu0 %v335
    %v337 = vpop.xlane.xlu0 %336
    %v338 = vsel %vm229, %v182, inf
    %339 = vmin.xlane.f32.xlu0 %v338
    %v340 = vpop.xlane.xlu0 %339
    %v341 = vsel %vm225, %v183, inf
    %342 = vmin.xlane.f32.xlu0 %v341
    %v343 = vpop.xlane.xlu0 %342
    %v344 = vsel %vm229, %v184, inf
    %345 = vmin.xlane.f32.xlu0 %v344
    %v346 = vpop.xlane.xlu0 %345
    %v347 = vsel %vm225, %v185, inf
    %348 = vmin.xlane.f32.xlu0 %v347
    %v349 = vpop.xlane.xlu0 %348
    %v350 = vsel %vm229, %v186, inf
    %351 = vmin.xlane.f32.xlu0 %v350
    %v352 = vpop.xlane.xlu0 %351
    %v353 = vsel %vm225, %v187, inf
    %354 = vmin.xlane.f32.xlu0 %v353
    %v355 = vpop.xlane.xlu0 %354
    %v356 = vsel %vm229, %v188, inf
    %357 = vmin.xlane.f32.xlu0 %v356
    %v358 = vpop.xlane.xlu0 %357
    %v359 = vsel %vm225, %v189, inf
    %360 = vmin.xlane.f32.xlu0 %v359
    %v361 = vpop.xlane.xlu0 %360
    %v362 = vsel %vm229, %v190, inf
    %363 = vmin.xlane.f32.xlu0 %v362
    %v364 = vpop.xlane.xlu0 %363
    %v365 = vsel %vm225, %v191, inf
    %366 = vmin.xlane.f32.xlu0 %v365
    %v367 = vpop.xlane.xlu0 %366
    %v368 = vsel %vm229, %v192, inf
    %369 = vmin.xlane.f32.xlu0 %v368
    %v370 = vpop.xlane.xlu0 %369
    %v371 = vsel %vm225, %v193, inf
    %372 = vmin.xlane.f32.xlu0 %v371
    %v373 = vpop.xlane.xlu0 %372
    %v374 = vsel %vm229, %v194, inf
    %375 = vmin.xlane.f32.xlu0 %v374
    %v376 = vpop.xlane.xlu0 %375
    %v377 = vsel %vm225, %v195, inf
    %378 = vmin.xlane.f32.xlu0 %v377
    %v379 = vpop.xlane.xlu0 %378
    %v380 = vsel %vm229, %v196, inf
    %381 = vmin.xlane.f32.xlu0 %v380
    %v382 = vpop.xlane.xlu0 %381
    %v383 = vsel %vm225, %v197, inf
    %384 = vmin.xlane.f32.xlu0 %v383
    %v385 = vpop.xlane.xlu0 %384
    %v386 = vsel %vm229, %v198, inf
    %387 = vmin.xlane.f32.xlu0 %v386
    %v388 = vpop.xlane.xlu0 %387
    %v389 = vsel %vm225, %v199, inf
    %390 = vmin.xlane.f32.xlu0 %v389
    %v391 = vpop.xlane.xlu0 %390
    %v392 = vsel %vm229, %v200, inf
    %393 = vmin.xlane.f32.xlu0 %v392
    %v394 = vpop.xlane.xlu0 %393
    %v395 = vsel %vm225, %v201, inf
    %396 = vmin.xlane.f32.xlu0 %v395
    %v397 = vpop.xlane.xlu0 %396
    %v398 = vsel %vm229, %v202, inf
    %399 = vmin.xlane.f32.xlu0 %v398
    %v400 = vpop.xlane.xlu0 %399
    %v401 = vsel %vm225, %v203, inf
    %402 = vmin.xlane.f32.xlu0 %v401
    %v403 = vpop.xlane.xlu0 %402
    %v404 = vsel %vm229, %v204, inf
    %405 = vmin.xlane.f32.xlu0 %v404
    %v406 = vpop.xlane.xlu0 %405
    %v407 = vsel %vm225, %v205, inf
    %408 = vmin.xlane.f32.xlu0 %v407
    %v409 = vpop.xlane.xlu0 %408
    %v410 = vsel %vm229, %v206, inf
    %411 = vmin.xlane.f32.xlu0 %v410
    %v412 = vpop.xlane.xlu0 %411
    %v413 = vsel %vm225, %v207, inf
    %414 = vmin.xlane.f32.xlu0 %v413
    %v415 = vpop.xlane.xlu0 %414
    %v416 = vsel %vm229, %v208, inf
    %417 = vmin.xlane.f32.xlu0 %v416
    %v418 = vpop.xlane.xlu0 %417
    %v419 = vsel %vm225, %v209, inf
    %420 = vmin.xlane.f32.xlu0 %v419
    %v421 = vpop.xlane.xlu0 %420
    %v422 = vsel %vm229, %v210, inf
    %423 = vmin.xlane.f32.xlu0 %v422
    %v424 = vpop.xlane.xlu0 %423
    %v425 = vsel %vm225, %v211, inf
    %426 = vmin.xlane.f32.xlu0 %v425
    %v427 = vpop.xlane.xlu0 %426
    %v428 = vsel %vm229, %v212, inf
    %429 = vmin.xlane.f32.xlu0 %v428
    %v430 = vpop.xlane.xlu0 %429
    %v431 = vsel %vm225, %v213, inf
    %432 = vmin.xlane.f32.xlu0 %v431
    %v433 = vpop.xlane.xlu0 %432
    %v434 = vsel %vm229, %v214, inf
    %435 = vmin.xlane.f32.xlu0 %v434
    %v436 = vpop.xlane.xlu0 %435
    %v437 = vsel %vm225, %v215, inf
    %438 = vmin.xlane.f32.xlu0 %v437
    %v439 = vpop.xlane.xlu0 %438
    %v440 = vsel %vm229, %v216, inf
    %441 = vmin.xlane.f32.xlu0 %v440
    %v442 = vpop.xlane.xlu0 %441
    %v443 = vsel %vm225, %v217, inf
    %444 = vmin.xlane.f32.xlu0 %v443
    %v445 = vpop.xlane.xlu0 %444
    %v446 = vsel %vm229, %v218, inf
    %447 = vmin.xlane.f32.xlu0 %v446
    %v448 = vpop.xlane.xlu0 %447
    %v449 = vsel %vm225, %v219, inf
    %450 = vmin.xlane.f32.xlu0 %v449
    %v451 = vpop.xlane.xlu0 %450
    %v452 = vsel %vm229, %v220, inf
    %453 = vmin.xlane.f32.xlu0 %v452
    %v454 = vpop.xlane.xlu0 %453
    %v455 = vsel %vm225, %v221, inf
    %456 = vmin.xlane.f32.xlu0 %v455
    %v457 = vpop.xlane.xlu0 %456
    %v458 = vsel %vm229, %v222, inf
    %459 = vmin.xlane.f32.xlu0 %v458
    %v460 = vpop.xlane.xlu0 %459
    %v461 = vsel %vm225, %v223, inf
    %462 = vmin.xlane.f32.xlu0 %v461
    %v463 = vpop.xlane.xlu0 %462
    %v464 = vsel %vm229, %v224, inf
    %465 = vmin.xlane.f32.xlu0 %v464
    %v466 = vpop.xlane.xlu0 %465
    %v467 = vmin.f32 %v228, %v259
    %v468 = vmin.f32 %v467, %v289
    %v469 = vmin.f32 %v468, %v319
    %v470 = vmin.f32 %v469, %v349
    %v471 = vmin.f32 %v470, %v379
    %v472 = vmin.f32 %v471, %v409
    %v473 = vmin.f32 %v472, %v439
    %vm474 = vcmask 1040384
    %v475 = vsel %vm474, %v232, inf
    %v476 = vsel %vm474, %v262, inf
    %v477 = vmin.f32 %v475, %v476
    %v478 = vsel %vm474, %v292, inf
    %v479 = vmin.f32 %v477, %v478
    %v480 = vsel %vm474, %v322, inf
    %v481 = vmin.f32 %v479, %v480
    %v482 = vsel %vm474, %v352, inf
    %v483 = vmin.f32 %v481, %v482
    %v484 = vsel %vm474, %v382, inf
    %v485 = vmin.f32 %v483, %v484
    %v486 = vsel %vm474, %v412, inf
    %v487 = vmin.f32 %v485, %v486
    %v488 = vsel %vm474, %v442, inf
    %v489 = vmin.f32 %v487, %v488
    %v490 = vmin.f32 %v235, %v265
    %v491 = vmin.f32 %v490, %v295
    %v492 = vmin.f32 %v491, %v325
    %v493 = vmin.f32 %v492, %v355
    %v494 = vmin.f32 %v493, %v385
    %v495 = vmin.f32 %v494, %v415
    %v496 = vmin.f32 %v495, %v445
    %v497 = vsel %vm474, %v238, inf
    %v498 = vsel %vm474, %v268, inf
    %v499 = vmin.f32 %v497, %v498
    %v500 = vsel %vm474, %v298, inf
    %v501 = vmin.f32 %v499, %v500
    %v502 = vsel %vm474, %v328, inf
    %v503 = vmin.f32 %v501, %v502
    %v504 = vsel %vm474, %v358, inf
    %v505 = vmin.f32 %v503, %v504
    %v506 = vsel %vm474, %v388, inf
    %v507 = vmin.f32 %v505, %v506
    %v508 = vsel %vm474, %v418, inf
    %v509 = vmin.f32 %v507, %v508
    %v510 = vsel %vm474, %v448, inf
    %v511 = vmin.f32 %v509, %v510
    %v512 = vmin.f32 %v241, %v271
    %v513 = vmin.f32 %v512, %v301
    %v514 = vmin.f32 %v513, %v331
    %v515 = vmin.f32 %v514, %v361
    %v516 = vmin.f32 %v515, %v391
    %v517 = vmin.f32 %v516, %v421
    %v518 = vmin.f32 %v517, %v451
    %v519 = vsel %vm474, %v244, inf
    %v520 = vsel %vm474, %v274, inf
    %v521 = vmin.f32 %v519, %v520
    %v522 = vsel %vm474, %v304, inf
    %v523 = vmin.f32 %v521, %v522
    %v524 = vsel %vm474, %v334, inf
    %v525 = vmin.f32 %v523, %v524
    %v526 = vsel %vm474, %v364, inf
    %v527 = vmin.f32 %v525, %v526
    %v528 = vsel %vm474, %v394, inf
    %v529 = vmin.f32 %v527, %v528
    %v530 = vsel %vm474, %v424, inf
    %v531 = vmin.f32 %v529, %v530
    %v532 = vsel %vm474, %v454, inf
    %v533 = vmin.f32 %v531, %v532
    %v534 = vmin.f32 %v247, %v277
    %v535 = vmin.f32 %v534, %v307
    %v536 = vmin.f32 %v535, %v337
    %v537 = vmin.f32 %v536, %v367
    %v538 = vmin.f32 %v537, %v397
    %v539 = vmin.f32 %v538, %v427
    %v540 = vmin.f32 %v539, %v457
    %v541 = vsel %vm474, %v250, inf
    %v542 = vsel %vm474, %v280, inf
    %v543 = vmin.f32 %v541, %v542
    %v544 = vsel %vm474, %v310, inf
    %v545 = vmin.f32 %v543, %v544
    %v546 = vsel %vm474, %v340, inf
    %v547 = vmin.f32 %v545, %v546
    %v548 = vsel %vm474, %v370, inf
    %v549 = vmin.f32 %v547, %v548
    %v550 = vsel %vm474, %v400, inf
    %v551 = vmin.f32 %v549, %v550
    %v552 = vsel %vm474, %v430, inf
    %v553 = vmin.f32 %v551, %v552
    %v554 = vsel %vm474, %v460, inf
    %v555 = vmin.f32 %v553, %v554
    %v556 = vmin.f32 %v253, %v283
    %v557 = vmin.f32 %v556, %v313
    %v558 = vmin.f32 %v557, %v343
    %v559 = vmin.f32 %v558, %v373
    %v560 = vmin.f32 %v559, %v403
    %v561 = vmin.f32 %v560, %v433
    %v562 = vmin.f32 %v561, %v463
    %v563 = vsel %vm474, %v256, inf
    %v564 = vsel %vm474, %v286, inf
    %v565 = vmin.f32 %v563, %v564
    %v566 = vsel %vm474, %v316, inf
    %v567 = vmin.f32 %v565, %v566
    %v568 = vsel %vm474, %v346, inf
    %v569 = vmin.f32 %v567, %v568
    %v570 = vsel %vm474, %v376, inf
    %v571 = vmin.f32 %v569, %v570
    %v572 = vsel %vm474, %v406, inf
    %v573 = vmin.f32 %v571, %v572
    %v574 = vsel %vm474, %v436, inf
    %v575 = vmin.f32 %v573, %v574
    %v576 = vsel %vm474, %v466, inf
    %v577 = vmin.f32 %v575, %v576
    %v588 = vlaneseq
    %v589 = vshrl.u32 %v588, 7
    %v590 = vsub.s32 %v82, %v589
    %v591 = vrot.slane %v473, %v590
    %v592 = vlaneseq
    %v593 = vshrl.u32 %v592, 7
    %v594 = vsub.s32 %v87, %v593
    %v595 = vrot.slane %v489, %v594
    %v596 = vsel %vm92, %v595, %v591
    %v597 = vlaneseq
    %v598 = vshrl.u32 %v597, 7
    %v599 = vsub.s32 %v82, %v598
    %v600 = vrot.slane %v496, %v599
    %v601 = vlaneseq
    %v602 = vshrl.u32 %v601, 7
    %v603 = vsub.s32 %v87, %v602
    %v604 = vrot.slane %v511, %v603
    %v605 = vsel %vm92, %v604, %v600
    %v606 = vlaneseq
    %v607 = vshrl.u32 %v606, 7
    %v608 = vsub.s32 %v82, %v607
    %v609 = vrot.slane %v518, %v608
    %v610 = vlaneseq
    %v611 = vshrl.u32 %v610, 7
    %v612 = vsub.s32 %v87, %v611
    %v613 = vrot.slane %v533, %v612
    %v614 = vsel %vm92, %v613, %v609
    %v615 = vlaneseq
    %v616 = vshrl.u32 %v615, 7
    %v617 = vsub.s32 %v82, %v616
    %v618 = vrot.slane %v540, %v617
    %v619 = vlaneseq
    %v620 = vshrl.u32 %v619, 7
    %v621 = vsub.s32 %v87, %v620
    %v622 = vrot.slane %v555, %v621
    %v623 = vsel %vm92, %v622, %v618
    %v624 = vlaneseq
    %v625 = vshrl.u32 %v624, 7
    %v626 = vsub.s32 %v82, %v625
    %v627 = vrot.slane %v562, %v626
    %v628 = vlaneseq
    %v629 = vshrl.u32 %v628, 7
    %v630 = vsub.s32 %v87, %v629
    %v631 = vrot.slane %v577, %v630
    %v632 = vsel %vm92, %v631, %v627
    %v633 = vsel %vm130, %v605, %v596
    %v634 = vsel %vm132, %v614, %v633
    %v635 = vsel %vm134, %v623, %v634
    %v636 = vsel %vm136, %v632, %v635
    %638 = vst.msk [vmem:[%s5] sm:$0x1f] %vm139, %v636
    // Predicated region
    $region14: #{model_forward.1} parent=1 // pred_check
      _
    $region15: #{model_forward.1} parent=1 // pred_check_branch
      %640 = sbr.rel (0) target = $region17
    $region16: #{model_forward.1} parent=1 // pred_region
      %s642 = ssub.s32 16, 16
      %643 = vsyncadd [#allocation3], %s642
      %s645 = sshll.u32 [#allocation2], 4
      %s646 = int_to_ptr.vmem [resolvable:$true] %s645
      %648 = dma.vmem_to_hbm [thread:$0]  %s646, 16, %s3, [#allocation3]
    $region17: #{model_forward.1} parent=1 // pred_fallthru
      _
    // Predicated region
    $region18: #{model_forward.1} parent=1 // pred_check
      _
    $region19: #{model_forward.1} parent=1 // pred_check_branch
      %650 = sbr.rel (0) target = $region21
    $region20: #{model_forward.1} parent=1 // pred_region
      _
    $region21: #{model_forward.1} parent=1 // pred_fallthru
      _
    // Predicated region
    $region22: #{model_forward.1} parent=1 // pred_check
      _
    $region23: #{model_forward.1} parent=1 // pred_check_branch
      %652 = sbr.rel (0) target = $region25
    $region24: #{model_forward.1} parent=1 // pred_region
      _
    $region25: #{model_forward.1} parent=1 // pred_fallthru
      _
    // Predicated region
    $region26: #{model_forward.1} parent=1 // pred_check
      _
    $region27: #{model_forward.1} parent=1 // pred_check_branch
      %654 = sbr.rel (0) target = $region29
    $region28: #{model_forward.1} parent=1 // pred_region
      %655 = dma.done [#allocation3], 16
    $region29: #{model_forward.1} parent=1 // pred_fallthru
      _
    // Predicated region
    $region30: #{model_forward.1} parent=1 // pred_check
      _
    $region31: #{model_forward.1} parent=1 // pred_check_branch
      %657 = sbr.rel (0) target = $region33
    $region32: #{model_forward.1} parent=1 // pred_region
      _
    $region33: #{model_forward.1} parent=1 // pred_fallthru
      _
    // Predicated region
    $region34: #{model_forward.1} parent=1 // pred_check
      _
    $region35: #{model_forward.1} parent=1 // pred_check_branch
      %659 = sbr.rel (0) target = $region37
    $region36: #{model_forward.1} parent=1 // pred_region
      _
    $region37: #{model_forward.1} parent=1 // pred_fallthru
      _
    %660 = vsyncpa [#allocation3], 1

</llo_original>
